<compile_context>
chip_gen: v7x
topology: tpu7x:2x2x1
jax: 0.10.0
libtpu: 0.0.40
codegen_flags: <defaults>
</compile_context>

<pallas_src>
import jax
import jax.numpy as jnp
from jax.experimental import pallas as pl
from jax.experimental.pallas import tpu as pltpu


def _round_up(x, m):
    return ((x + m - 1) // m) * m


def _graphlet_mean_kernel(x_ref, m_ref, e_ref, w1_ref, b1_ref,
                          wm_ref, bm_ref, wo_ref, bo_ref, out_ref):
    x = x_ref[...]                                        # (Bt, G*D_in) f32
    m = m_ref[...]                                        # (Bt, G)      f32

    # Expand the per-graphlet mask across the flattened feature axis using a constant
    # 0/1 expansion matrix (tiny MXU matmul; avoids unsupported in-kernel reshapes).
    m_exp = jnp.dot(m, e_ref[...], preferred_element_type=jnp.float32)  # (Bt, G*D_in)
    xm = x * m_exp

    # Mean + first Linear of _Faggregate2, fused: W1 = tile(W2a, (G,1)) / G.
    h = jnp.dot(xm, w1_ref[...], preferred_element_type=jnp.float32) + b1_ref[...]
    h = jnp.maximum(h, 0.0)

    # Fused (W2b, Wo1) pair (no activation between them in the reference module).
    h = jnp.dot(h, wm_ref[...], preferred_element_type=jnp.float32) + bm_ref[...]
    h = jnp.maximum(h, 0.0)

    # Final Linear, emitted into a lane-dense 128-wide padded slab.
    out = jnp.dot(h, wo_ref[...], preferred_element_type=jnp.float32) + bo_ref[...]
    out_ref[...] = out.astype(out_ref.dtype)


def graphlet_aggregate_mean(graphlet_embed, graphlet_mask, params, *, b_tile=256):
    """graphlet_embed: (B, G, D_in), graphlet_mask: (B, G).
    params: dict with w2a (D_in,A), b2a (1,A), w2b (A,A), b2b (1,A),
            wo1 (A,A), bo1 (1,A), wo2 (A,out), bo2 (1,out)."""
    B, G, D_in = graphlet_embed.shape
    A = params["w2a"].shape[1]
    out_size = params["wo2"].shape[1]
    hi = jax.lax.Precision.HIGHEST

    # ---- parameter prep (done once, outside the kernel) ----------------------------
    w1 = jnp.tile(params["w2a"], (G, 1)) * (1.0 / G)                      # (G*D_in, A)
    b1 = params["b2a"]                                                    # (1, A)
    wm = jnp.dot(params["w2b"], params["wo1"], precision=hi)              # (A, A)
    bm = jnp.dot(params["b2b"], params["wo1"], precision=hi) + params["bo1"]
    out_pad = _round_up(max(out_size, 128), 128)                          # lane-dense out
    wo = jnp.pad(params["wo2"], ((0, 0), (0, out_pad - out_size)))        # (A, out_pad)
    bo = jnp.pad(params["bo2"], ((0, 0), (0, out_pad - out_size)))        # (1, out_pad)
    # 0/1 mask-expansion matrix: E[g, g*D_in + d] = 1.
    e = jnp.kron(jnp.eye(G, dtype=jnp.float32), jnp.ones((1, D_in), jnp.float32))

    # ---- batch tiling ----------------------------------------------------------------
    bt = min(b_tile, _round_up(B, 8))
    b_padded = _round_up(B, bt)
    x = graphlet_embed.reshape(B, G * D_in).astype(jnp.float32)
    m = graphlet_mask.astype(jnp.float32)
    if b_padded != B:
        x = jnp.pad(x, ((0, b_padded - B), (0, 0)))
        m = jnp.pad(m, ((0, b_padded - B), (0, 0)))
    grid = (b_padded // bt,)

    def full_spec(arr):
        nd = arr.ndim
        return pl.BlockSpec(arr.shape, lambda i, _nd=nd: (0,) * _nd)

    out = pl.pallas_call(
        _graphlet_mean_kernel,
        out_shape=jax.ShapeDtypeStruct((b_padded, out_pad), jnp.float32),
        grid=grid,
        in_specs=[
            pl.BlockSpec((bt, G * D_in), lambda i: (i, 0)),   # activations, batch-tiled
            pl.BlockSpec((bt, G), lambda i: (i, 0)),          # mask, batch-tiled
            full_spec(e),                                     # weights: VMEM-resident
            full_spec(w1), full_spec(b1),
            full_spec(wm), full_spec(bm),
            full_spec(wo), full_spec(bo),
        ],
        out_specs=pl.BlockSpec((bt, out_pad), lambda i: (i, 0)),
        compiler_params=pltpu.CompilerParams(
            dimension_semantics=("parallel",)),
    )(x, m, e, w1, b1, wm, bm, wo, bo)

    return out[:B, :out_size]


def _glorot(key, shape):
    fan_in, fan_out = shape
    limit = (6.0 / (fan_in + fan_out)) ** 0.5
    return jax.random.uniform(key, shape, jnp.float32, -limit, limit)


def init_params(key, in_size, aggregate_dim, out_size):
    ks = jax.random.split(key, 8)
    return {
        # _Faggregate2
        "w2a": _glorot(ks[0], (in_size, aggregate_dim)),
        "b2a": jax.random.uniform(ks[1], (1, aggregate_dim), jnp.float32, -0.1, 0.1),
        "w2b": _glorot(ks[2], (aggregate_dim, aggregate_dim)),
        "b2b": jax.random.uniform(ks[3], (1, aggregate_dim), jnp.float32, -0.1, 0.1),
        # _Fout
        "wo1": _glorot(ks[4], (aggregate_dim, aggregate_dim)),
        "bo1": jax.random.uniform(ks[5], (1, aggregate_dim), jnp.float32, -0.1, 0.1),
        "wo2": _glorot(ks[6], (aggregate_dim, out_size)),
        "bo2": jax.random.uniform(ks[7], (1, out_size), jnp.float32, -0.1, 0.1),
    }


def reference_forward(graphlet_embed, graphlet_mask, params):
    # Unfused pure-JAX reference matching the PyTorch module (mean divides by G,
    # including masked-out graphlets, exactly as th.mean does in the reference).
    x = graphlet_embed * graphlet_mask[:, :, None]
    pooled = jnp.mean(x, axis=1)
    h = jnp.maximum(pooled @ params["w2a"] + params["b2a"], 0.0)
    h = h @ params["w2b"] + params["b2b"]
    h = jnp.maximum(h @ params["wo1"] + params["bo1"], 0.0)
    return h @ params["wo2"] + params["bo2"]


if __name__ == "__main__":
    # Module config: aggregate_type='mean', graphlet_num=8, aggregate_dim=32,
    # in_size=32, out_size=16, is_neighbor=True.
    B, G, in_size, aggregate_dim, out_size = 8, 8, 32, 32, 16

    key = jax.random.PRNGKey(0)
    k_x, k_m, k_p, k_x2, k_m2 = jax.random.split(key, 5)

    graphlet_embed = jax.random.normal(k_x, (B, G, in_size), jnp.float32)
    graphlet_mask = jax.random.bernoulli(k_m, 0.7, (B, G)).astype(jnp.float32)
    params = init_params(k_p, in_size, aggregate_dim, out_size)

    out = graphlet_aggregate_mean(graphlet_embed, graphlet_mask, params)
    out = jax.block_until_ready(out)
    ref = reference_forward(graphlet_embed, graphlet_mask, params)
    assert out.shape == (B, out_size)
    assert jnp.allclose(out, ref, atol=1e-4, rtol=1e-4)

    # Second check exercising the batch grid + padding path (grid > 1 block).
    B2 = 300
    ge2 = jax.random.normal(k_x2, (B2, G, in_size), jnp.float32)
    gm2 = jax.random.bernoulli(k_m2, 0.7, (B2, G)).astype(jnp.float32)
    out2 = jax.block_until_ready(graphlet_aggregate_mean(ge2, gm2, params))
    ref2 = reference_forward(ge2, gm2, params)
    assert out2.shape == (B2, out_size)
    assert jnp.allclose(out2, ref2, atol=1e-4, rtol=1e-4)

    print("KERNEL_OK")
</pallas_src>

<mosaic_0001>
module attributes {stable_mosaic.version = 11 : i64} {
  func.func @_graphlet_mean_kernel(%arg0: i32, %arg1: memref<8x256xf32, #tpu.memory_space<vmem>>, %arg2: memref<8x8xf32, #tpu.memory_space<vmem>>, %arg3: memref<8x256xf32, #tpu.memory_space<vmem>>, %arg4: memref<256x32xf32, #tpu.memory_space<vmem>>, %arg5: memref<1x32xf32, #tpu.memory_space<vmem>>, %arg6: memref<32x32xf32, #tpu.memory_space<vmem>>, %arg7: memref<1x32xf32, #tpu.memory_space<vmem>>, %arg8: memref<32x128xf32, #tpu.memory_space<vmem>>, %arg9: memref<1x128xf32, #tpu.memory_space<vmem>>, %arg10: memref<8x128xf32, #tpu.memory_space<vmem>>) attributes {dimension_semantics = [#tpu.dimension_semantics<parallel>], iteration_bounds = array<i64: 1>, scalar_prefetch = 0 : i64, scratch_operands = 0 : i64, tpu.core_type = #tpu.core_type<tc>, window_params = [{transform_indices = @transform_0, window_bounds = array<i64: 8, 256>}, {transform_indices = @transform_1, window_bounds = array<i64: 8, 8>}, {pipeline_mode = #tpu.pipeline_mode<synchronous>, transform_indices = @transform_2, window_bounds = array<i64: 8, 256>}, {pipeline_mode = #tpu.pipeline_mode<synchronous>, transform_indices = @transform_3, window_bounds = array<i64: 256, 32>}, {pipeline_mode = #tpu.pipeline_mode<synchronous>, transform_indices = @transform_4, window_bounds = array<i64: 1, 32>}, {pipeline_mode = #tpu.pipeline_mode<synchronous>, transform_indices = @transform_5, window_bounds = array<i64: 32, 32>}, {pipeline_mode = #tpu.pipeline_mode<synchronous>, transform_indices = @transform_6, window_bounds = array<i64: 1, 32>}, {pipeline_mode = #tpu.pipeline_mode<synchronous>, transform_indices = @transform_7, window_bounds = array<i64: 32, 128>}, {pipeline_mode = #tpu.pipeline_mode<synchronous>, transform_indices = @transform_8, window_bounds = array<i64: 1, 128>}, {transform_indices = @transform_9, window_bounds = array<i64: 8, 128>}]} {
    %c0 = arith.constant 0 : index
    %c0_0 = arith.constant 0 : index
    %0 = vector.load %arg1[%c0, %c0_0] : memref<8x256xf32, #tpu.memory_space<vmem>>, vector<8x256xf32>
    %c0_1 = arith.constant 0 : index
    %c0_2 = arith.constant 0 : index
    %1 = vector.load %arg2[%c0_1, %c0_2] : memref<8x8xf32, #tpu.memory_space<vmem>>, vector<8x8xf32>
    %c0_3 = arith.constant 0 : index
    %c0_4 = arith.constant 0 : index
    %2 = vector.load %arg3[%c0_3, %c0_4] : memref<8x256xf32, #tpu.memory_space<vmem>>, vector<8x256xf32>
    %cst = arith.constant dense<0.000000e+00> : vector<8x256xf32>
    %3 = tpu.matmul %1, %2, %cst {dimension_numbers = #tpu.dot_dimension_numbers<[1], [0], [0], [1], [0, 0, 1, 1], [], []>} : vector<8x8xf32>, vector<8x256xf32>, vector<8x256xf32> -> vector<8x256xf32>
    %4 = arith.mulf %0, %3 : vector<8x256xf32>
    %c0_5 = arith.constant 0 : index
    %c0_6 = arith.constant 0 : index
    %5 = vector.load %arg4[%c0_5, %c0_6] : memref<256x32xf32, #tpu.memory_space<vmem>>, vector<256x32xf32>
    %cst_7 = arith.constant dense<0.000000e+00> : vector<8x32xf32>
    %6 = tpu.matmul %4, %5, %cst_7 {dimension_numbers = #tpu.dot_dimension_numbers<[1], [0], [0], [1], [0, 0, 1, 1], [], []>} : vector<8x256xf32>, vector<256x32xf32>, vector<8x32xf32> -> vector<8x32xf32>
    %c0_8 = arith.constant 0 : index
    %c0_9 = arith.constant 0 : index
    %7 = vector.load %arg5[%c0_8, %c0_9] : memref<1x32xf32, #tpu.memory_space<vmem>>, vector<1x32xf32>
    %8 = vector.broadcast %7 : vector<1x32xf32> to vector<8x32xf32>
    %9 = arith.addf %6, %8 : vector<8x32xf32>
    %cst_10 = arith.constant 0.000000e+00 : f32
    %10 = vector.broadcast %cst_10 : f32 to vector<8x32xf32>
    %11 = arith.maximumf %9, %10 : vector<8x32xf32>
    %c0_11 = arith.constant 0 : index
    %c0_12 = arith.constant 0 : index
    %12 = vector.load %arg6[%c0_11, %c0_12] : memref<32x32xf32, #tpu.memory_space<vmem>>, vector<32x32xf32>
    %cst_13 = arith.constant dense<0.000000e+00> : vector<8x32xf32>
    %13 = tpu.matmul %11, %12, %cst_13 {dimension_numbers = #tpu.dot_dimension_numbers<[1], [0], [0], [1], [0, 0, 1, 1], [], []>} : vector<8x32xf32>, vector<32x32xf32>, vector<8x32xf32> -> vector<8x32xf32>
    %c0_14 = arith.constant 0 : index
    %c0_15 = arith.constant 0 : index
    %14 = vector.load %arg7[%c0_14, %c0_15] : memref<1x32xf32, #tpu.memory_space<vmem>>, vector<1x32xf32>
    %15 = vector.broadcast %14 : vector<1x32xf32> to vector<8x32xf32>
    %16 = arith.addf %13, %15 : vector<8x32xf32>
    %cst_16 = arith.constant 0.000000e+00 : f32
    %17 = vector.broadcast %cst_16 : f32 to vector<8x32xf32>
    %18 = arith.maximumf %16, %17 : vector<8x32xf32>
    %c0_17 = arith.constant 0 : index
    %c0_18 = arith.constant 0 : index
    %19 = vector.load %arg8[%c0_17, %c0_18] : memref<32x128xf32, #tpu.memory_space<vmem>>, vector<32x128xf32>
    %cst_19 = arith.constant dense<0.000000e+00> : vector<8x128xf32>
    %20 = tpu.matmul %18, %19, %cst_19 {dimension_numbers = #tpu.dot_dimension_numbers<[1], [0], [0], [1], [0, 0, 1, 1], [], []>} : vector<8x32xf32>, vector<32x128xf32>, vector<8x128xf32> -> vector<8x128xf32>
    %c0_20 = arith.constant 0 : index
    %c0_21 = arith.constant 0 : index
    %21 = vector.load %arg9[%c0_20, %c0_21] : memref<1x128xf32, #tpu.memory_space<vmem>>, vector<1x128xf32>
    %22 = vector.broadcast %21 : vector<1x128xf32> to vector<8x128xf32>
    %23 = arith.addf %20, %22 : vector<8x128xf32>
    %c0_22 = arith.constant 0 : index
    %c0_23 = arith.constant 0 : index
    %24 = vector.load %arg10[%c0_22, %c0_23] : memref<8x128xf32, #tpu.memory_space<vmem>>, vector<8x128xf32>
    tpu.vector_store %arg10[%c0_22, %c0_23], %23 {strides = array<i32>} : memref<8x128xf32, #tpu.memory_space<vmem>>, vector<8x128xf32>,
    return
  }
  func.func @transform_0(%arg0: i32) -> (i32, i32) {
    %c0_i32 = arith.constant 0 : i32
    %c0_i32_0 = arith.constant 0 : i32
    return %arg0, %c0_i32 : i32, i32
  }
  func.func @transform_1(%arg0: i32) -> (i32, i32) {
    %c0_i32 = arith.constant 0 : i32
    %c0_i32_0 = arith.constant 0 : i32
    return %arg0, %c0_i32 : i32, i32
  }
  func.func @transform_2(%arg0: i32) -> (i32, i32) {
    %c0_i32 = arith.constant 0 : i32
    %c0_i32_0 = arith.constant 0 : i32
    %c0_i32_1 = arith.constant 0 : i32
    return %c0_i32, %c0_i32_0 : i32, i32
  }
  func.func @transform_3(%arg0: i32) -> (i32, i32) {
    %c0_i32 = arith.constant 0 : i32
    %c0_i32_0 = arith.constant 0 : i32
    %c0_i32_1 = arith.constant 0 : i32
    return %c0_i32, %c0_i32_0 : i32, i32
  }
  func.func @transform_4(%arg0: i32) -> (i32, i32) {
    %c0_i32 = arith.constant 0 : i32
    %c0_i32_0 = arith.constant 0 : i32
    %c0_i32_1 = arith.constant 0 : i32
    return %c0_i32, %c0_i32_0 : i32, i32
  }
  func.func @transform_5(%arg0: i32) -> (i32, i32) {
    %c0_i32 = arith.constant 0 : i32
    %c0_i32_0 = arith.constant 0 : i32
    %c0_i32_1 = arith.constant 0 : i32
    return %c0_i32, %c0_i32_0 : i32, i32
  }
  func.func @transform_6(%arg0: i32) -> (i32, i32) {
    %c0_i32 = arith.constant 0 : i32
    %c0_i32_0 = arith.constant 0 : i32
    %c0_i32_1 = arith.constant 0 : i32
    return %c0_i32, %c0_i32_0 : i32, i32
  }
  func.func @transform_7(%arg0: i32) -> (i32, i32) {
    %c0_i32 = arith.constant 0 : i32
    %c0_i32_0 = arith.constant 0 : i32
    %c0_i32_1 = arith.constant 0 : i32
    return %c0_i32, %c0_i32_0 : i32, i32
  }
  func.func @transform_8(%arg0: i32) -> (i32, i32) {
    %c0_i32 = arith.constant 0 : i32
    %c0_i32_0 = arith.constant 0 : i32
    %c0_i32_1 = arith.constant 0 : i32
    return %c0_i32, %c0_i32_0 : i32, i32
  }
  func.func @transform_9(%arg0: i32) -> (i32, i32) {
    %c0_i32 = arith.constant 0 : i32
    %c0_i32_0 = arith.constant 0 : i32
    return %arg0, %c0_i32 : i32, i32
  }
}

</mosaic_0001>

<llo_original>
// kernel: tpu_custom_call.1
$region0: #{tpu_custom_call.1}
  #allocation0 [shape = 'u32[]', space=smem, size = 0x4, offset = 0x4, fixed_abs, tag = 'smem constant byte address 0x4 - core index']
  #allocation1 [shape = 'u32[144,128]{1,0:T(1,128)}', space=vmem, size = 0x12000, scoped, tag = 'internal scratch']
  %s0 = inlined_call_operand.vmem [shape: f32[8,256], index: 0, kind: input, shape index: {}]
  %s1 = inlined_call_operand.vmem [shape: f32[8,8], index: 1, kind: input, shape index: {}]
  %s2 = inlined_call_operand.vmem [shape: f32[8,256], index: 2, kind: input, shape index: {}]
  %s3 = inlined_call_operand.vmem [shape: f32[256,32], index: 3, kind: input, shape index: {}]
  %s4 = inlined_call_operand.vmem [shape: f32[1,32], index: 4, kind: input, shape index: {}]
  %s5 = inlined_call_operand.vmem [shape: f32[32,32], index: 5, kind: input, shape index: {}]
  %s6 = inlined_call_operand.vmem [shape: f32[1,32], index: 6, kind: input, shape index: {}]
  %s7 = inlined_call_operand.vmem [shape: f32[32,128], index: 7, kind: input, shape index: {}]
  %s8 = inlined_call_operand.vmem [shape: f32[1,128], index: 8, kind: input, shape index: {}]
  %s9 = inlined_call_operand.hbm [shape: f32[8,128], index: 9, kind: output, shape index: {}]
  %s10 = sld [smem:[#allocation0]]
  $region46: #{tpu_custom_call.1} parent=0
    _
  %s12 = ssub.s32 1, %s10
  %s13 = scalar_select 0, %s12, %s10
  $region1: #{tpu_custom_call.1} parent=0
    #allocation2 [shape = 'u8[4096]{0}', space=vmem, size = 0x1000, scoped, tag = 'output window, operand 0, single buffered']
    #allocation3 [shape = 's32[1]{0}', space=sflag, size = 0x4, scoped, tag = 'scoped memory for tpu_custom_call.1']
    %14 = vsyncpa [#allocation3], 0
    // Predicated region
    $region2: #{tpu_custom_call.1} parent=1 // pred_check
      _
    $region3: #{tpu_custom_call.1} parent=1 // pred_check_branch
      %16 = sbr.rel (0) target = $region5
    $region4: #{tpu_custom_call.1} parent=1 // pred_region
      _
    $region5: #{tpu_custom_call.1} parent=1 // pred_fallthru
      _
    // Predicated region
    $region6: #{tpu_custom_call.1} parent=1 // pred_check
      _
    $region7: #{tpu_custom_call.1} parent=1 // pred_check_branch
      %18 = sbr.rel (0) target = $region9
    $region8: #{tpu_custom_call.1} parent=1 // pred_region
      _
    $region9: #{tpu_custom_call.1} parent=1 // pred_fallthru
      _
    // Predicated region
    $region10: #{tpu_custom_call.1} parent=1 // pred_check
      _
    $region11: #{tpu_custom_call.1} parent=1 // pred_check_branch
      %20 = sbr.rel (0) target = $region13
    $region12: #{tpu_custom_call.1} parent=1 // pred_region
      _
    $region13: #{tpu_custom_call.1} parent=1 // pred_fallthru
      _
    // Predicated region
    $region14: #{tpu_custom_call.1} parent=1 // pred_check
      _
    $region15: #{tpu_custom_call.1} parent=1 // pred_check_branch
      %22 = sbr.rel (0) target = $region17
    $region16: #{tpu_custom_call.1} parent=1 // pred_region
      _
    $region17: #{tpu_custom_call.1} parent=1 // pred_fallthru
      _
    // Predicated region
    $region18: #{tpu_custom_call.1} parent=1 // pred_check
      _
    $region19: #{tpu_custom_call.1} parent=1 // pred_check_branch
      %24 = sbr.rel (0) target = $region21
    $region20: #{tpu_custom_call.1} parent=1 // pred_region
      _
    $region21: #{tpu_custom_call.1} parent=1 // pred_fallthru
      _
    // Predicated region
    $region22: #{tpu_custom_call.1} parent=1 // pred_check
      _
    $region23: #{tpu_custom_call.1} parent=1 // pred_check_branch
      %26 = sbr.rel (0) target = $region25
    $region24: #{tpu_custom_call.1} parent=1 // pred_region
      _
    $region25: #{tpu_custom_call.1} parent=1 // pred_fallthru
      _
    // Predicated region
    $region26: #{tpu_custom_call.1} parent=1 // pred_check
      _
    $region27: #{tpu_custom_call.1} parent=1 // pred_check_branch
      %28 = sbr.rel (0) target = $region29
    $region28: #{tpu_custom_call.1} parent=1 // pred_region
      _
    $region29: #{tpu_custom_call.1} parent=1 // pred_fallthru
      _
    // Predicated region
    $region30: #{tpu_custom_call.1} parent=1 // pred_check
      _
    $region31: #{tpu_custom_call.1} parent=1 // pred_check_branch
      %30 = sbr.rel (0) target = $region33
    $region32: #{tpu_custom_call.1} parent=1 // pred_region
      _
    $region33: #{tpu_custom_call.1} parent=1 // pred_fallthru
      _
    // Predicated region
    $region34: #{tpu_custom_call.1} parent=1 // pred_check
      _
    $region35: #{tpu_custom_call.1} parent=1 // pred_check_branch
      %32 = sbr.rel (0) target = $region37
    $region36: #{tpu_custom_call.1} parent=1 // pred_region
      _
    $region37: #{tpu_custom_call.1} parent=1 // pred_fallthru
      _
    %v33 = vld [vmem:[%s0] sm:$0xff]
    %v34 = vld [vmem:[%s0 + $0x8] sm:$0xff]
    %v35 = vld [vmem:[%s1] sm:$0xff]
    %v36 = vld [vmem:[%s2] sm:$0xff]
    %v37 = vld [vmem:[%s2 + $0x8] sm:$0xff]
    %vm38 = vcmask 64512
    %v40 = vsel %vm38, %v35, 0
    %42 = vmatprep.subr.mxu0 %v37
    %43 = vmatpush1.msra.mxu0 %v36
    %44 = vmatprep.subr.mxu0 0.0
    %45 = vmatpush1.msra.mxu0 0.0
    %46 = vmatprep.subr.mxu0 0.0
    %47 = vmatpush1.msra.mxu0 0.0
    %48 = vmatprep.subr.mxu0 0.0
    %49 = vmatpush1.msra.mxu0 0.0
    %50 = vmatprep.subr.mxu0 0.0
    %51 = vmatpush1.msra.mxu0 0.0
    %52 = vmatprep.subr.mxu0 0.0
    %53 = vmatpush1.msra.mxu0 0.0
    %54 = vmatprep.subr.mxu0 0.0
    %55 = vmatpush1.msra.mxu0 0.0
    %56 = vmatprep.subr.mxu0 0.0
    %57 = vmatpush1.msra.mxu0 0.0
    %58 = vmatprep.subr.mxu0 0.0
    %59 = vmatpush1.msra.mxu0 0.0
    %60 = vmatprep.subr.mxu0 0.0
    %61 = vmatpush1.msra.mxu0 0.0
    %62 = vmatprep.subr.mxu0 0.0
    %63 = vmatpush1.msra.mxu0 0.0
    %64 = vmatprep.subr.mxu0 0.0
    %65 = vmatpush1.msra.mxu0 0.0
    %66 = vmatprep.subr.mxu0 0.0
    %67 = vmatpush1.msra.mxu0 0.0
    %68 = vmatprep.subr.mxu0 0.0
    %69 = vmatpush1.msra.mxu0 0.0
    %70 = vmatprep.subr.mxu0 0.0
    %71 = vmatpush1.msra.mxu0 0.0
    %72 = vmatprep.subr.mxu0 0.0
    %73 = vmatpush1.msra.mxu0 0.0
    %74 = vmatprep.subr.mxu0 0.0
    %75 = vmatpush1.msra.mxu0 0.0
    %76 = vmatprep.subr.mxu0 0.0
    %77 = vmatpush1.msra.mxu0 0.0
    %78 = vmatprep.subr.mxu0 0.0
    %79 = vmatpush1.msra.mxu0 0.0
    %80 = vmatprep.subr.mxu0 0.0
    %81 = vmatpush1.msra.mxu0 0.0
    %82 = vmatprep.subr.mxu0 0.0
    %83 = vmatpush1.msra.mxu0 0.0
    %84 = vmatprep.subr.mxu0 0.0
    %85 = vmatpush1.msra.mxu0 0.0
    %86 = vmatprep.subr.mxu0 0.0
    %87 = vmatpush1.msra.mxu0 0.0
    %88 = vmatprep.subr.mxu0 0.0
    %89 = vmatpush1.msra.mxu0 0.0
    %90 = vmatprep.subr.mxu0 0.0
    %91 = vmatpush1.msra.mxu0 0.0
    %92 = vmatprep.subr.mxu0 0.0
    %93 = vmatpush1.msra.mxu0 0.0
    %94 = vmatprep.subr.mxu0 0.0
    %95 = vmatpush1.msra.mxu0 0.0
    %96 = vmatprep.subr.mxu0 0.0
    %97 = vmatpush1.msra.mxu0 0.0
    %98 = vmatprep.subr.mxu0 0.0
    %99 = vmatpush1.msra.mxu0 0.0
    %100 = vmatprep.subr.mxu0 0.0
    %101 = vmatpush1.msra.mxu0 0.0
    %102 = vmatprep.subr.mxu0 0.0
    %103 = vmatpush1.msra.mxu0 0.0
    %104 = vmatprep.subr.mxu0 0.0
    %105 = vmatpush1.msra.mxu0 0.0
    %106 = vmatprep.mubr.f32.mxu0 0.0
    %107 = vmatmul.mubr.f32.gmra.mrb[0].mxu0 %v40
    %v108 = vpop.f32.mrb[0].mxu0
    %v109 = vadd.f32 0.0, %v108
    %v110 = vpop.f32.mrb[0].mxu0
    %v111 = vadd.f32 0.0, %v110
    %112 = vdwg.mxu0
    %v113 = vmul.f32 %v33, %v109
    %v114 = vmul.f32 %v34, %v111
    %v115 = vld [vmem:[%s3] sm:$0xff]
    %v116 = vld [vmem:[%s3 + $0x8] sm:$0xff]
    %v117 = vld [vmem:[%s3 + $0x10] sm:$0xff]
    %v118 = vld [vmem:[%s3 + $0x18] sm:$0xff]
    %v119 = vld [vmem:[%s3 + $0x20] sm:$0xff]
    %v120 = vld [vmem:[%s3 + $0x28] sm:$0xff]
    %v121 = vld [vmem:[%s3 + $0x30] sm:$0xff]
    %v122 = vld [vmem:[%s3 + $0x38] sm:$0xff]
    %v123 = vld [vmem:[%s3 + $0x40] sm:$0xff]
    %v124 = vld [vmem:[%s3 + $0x48] sm:$0xff]
    %v125 = vld [vmem:[%s3 + $0x50] sm:$0xff]
    %v126 = vld [vmem:[%s3 + $0x58] sm:$0xff]
    %v127 = vld [vmem:[%s3 + $0x60] sm:$0xff]
    %v128 = vld [vmem:[%s3 + $0x68] sm:$0xff]
    %v129 = vld [vmem:[%s3 + $0x70] sm:$0xff]
    %v130 = vld [vmem:[%s3 + $0x78] sm:$0xff]
    %v131 = vld [vmem:[%s3 + $0x80] sm:$0xff]
    %v132 = vld [vmem:[%s3 + $0x88] sm:$0xff]
    %v133 = vld [vmem:[%s3 + $0x90] sm:$0xff]
    %v134 = vld [vmem:[%s3 + $0x98] sm:$0xff]
    %v135 = vld [vmem:[%s3 + $0xa0] sm:$0xff]
    %v136 = vld [vmem:[%s3 + $0xa8] sm:$0xff]
    %v137 = vld [vmem:[%s3 + $0xb0] sm:$0xff]
    %v138 = vld [vmem:[%s3 + $0xb8] sm:$0xff]
    %v139 = vld [vmem:[%s3 + $0xc0] sm:$0xff]
    %v140 = vld [vmem:[%s3 + $0xc8] sm:$0xff]
    %v141 = vld [vmem:[%s3 + $0xd0] sm:$0xff]
    %v142 = vld [vmem:[%s3 + $0xd8] sm:$0xff]
    %v143 = vld [vmem:[%s3 + $0xe0] sm:$0xff]
    %v144 = vld [vmem:[%s3 + $0xe8] sm:$0xff]
    %v145 = vld [vmem:[%s3 + $0xf0] sm:$0xff]
    %v146 = vld [vmem:[%s3 + $0xf8] sm:$0xff]
    %v147 = vld [vmem:[%s4] sm:$0x1]
    %v149 = vlaneseq
    %v150 = vshrl.u32 %v149, 7
    %v151 = vsub.s32 0, %v150
    %v152 = vrot.slane %v147, %v151
    %154 = vmatprep.subr.mxu0 0.0
    %155 = vmatpush1.msra.mxu0 %v115
    %156 = vmatprep.subr.mxu0 0.0
    %157 = vmatpush1.msra.mxu0 %v116
    %158 = vmatprep.subr.mxu0 0.0
    %159 = vmatpush1.msra.mxu0 %v117
    %160 = vmatprep.subr.mxu0 0.0
    %161 = vmatpush1.msra.mxu0 %v118
    %162 = vmatprep.subr.mxu0 0.0
    %163 = vmatpush1.msra.mxu0 %v119
    %164 = vmatprep.subr.mxu0 0.0
    %165 = vmatpush1.msra.mxu0 %v120
    %166 = vmatprep.subr.mxu0 0.0
    %167 = vmatpush1.msra.mxu0 %v121
    %168 = vmatprep.subr.mxu0 0.0
    %169 = vmatpush1.msra.mxu0 %v122
    %170 = vmatprep.subr.mxu0 0.0
    %171 = vmatpush1.msra.mxu0 %v123
    %172 = vmatprep.subr.mxu0 0.0
    %173 = vmatpush1.msra.mxu0 %v124
    %174 = vmatprep.subr.mxu0 0.0
    %175 = vmatpush1.msra.mxu0 %v125
    %176 = vmatprep.subr.mxu0 0.0
    %177 = vmatpush1.msra.mxu0 %v126
    %178 = vmatprep.subr.mxu0 0.0
    %179 = vmatpush1.msra.mxu0 %v127
    %180 = vmatprep.subr.mxu0 0.0
    %181 = vmatpush1.msra.mxu0 %v128
    %182 = vmatprep.subr.mxu0 0.0
    %183 = vmatpush1.msra.mxu0 %v129
    %184 = vmatprep.subr.mxu0 0.0
    %185 = vmatpush1.msra.mxu0 %v130
    %186 = vmatprep.subr.mxu0 0.0
    %187 = vmatpush1.msra.mxu0 %v131
    %188 = vmatprep.subr.mxu0 0.0
    %189 = vmatpush1.msra.mxu0 %v132
    %190 = vmatprep.subr.mxu0 0.0
    %191 = vmatpush1.msra.mxu0 %v133
    %192 = vmatprep.subr.mxu0 0.0
    %193 = vmatpush1.msra.mxu0 %v134
    %194 = vmatprep.subr.mxu0 0.0
    %195 = vmatpush1.msra.mxu0 %v135
    %196 = vmatprep.subr.mxu0 0.0
    %197 = vmatpush1.msra.mxu0 %v136
    %198 = vmatprep.subr.mxu0 0.0
    %199 = vmatpush1.msra.mxu0 %v137
    %200 = vmatprep.subr.mxu0 0.0
    %201 = vmatpush1.msra.mxu0 %v138
    %202 = vmatprep.subr.mxu0 0.0
    %203 = vmatpush1.msra.mxu0 %v139
    %204 = vmatprep.subr.mxu0 0.0
    %205 = vmatpush1.msra.mxu0 %v140
    %206 = vmatprep.subr.mxu0 0.0
    %207 = vmatpush1.msra.mxu0 %v141
    %208 = vmatprep.subr.mxu0 0.0
    %209 = vmatpush1.msra.mxu0 %v142
    %210 = vmatprep.subr.mxu0 0.0
    %211 = vmatpush1.msra.mxu0 %v143
    %212 = vmatprep.subr.mxu0 0.0
    %213 = vmatpush1.msra.mxu0 %v144
    %214 = vmatprep.subr.mxu0 0.0
    %215 = vmatpush1.msra.mxu0 %v145
    %216 = vmatprep.subr.mxu0 0.0
    %217 = vmatpush1.msra.mxu0 %v146
    %218 = vmatprep.mubr.f32.mxu0 %v114
    %219 = vmatmul.mubr.f32.gmra.mrb[0].mxu0 %v113
    %v220 = vpop.f32.mrb[0].mxu0
    %v221 = vadd.f32 %v152, %v220
    %v222 = vpop.f32.mrb[0].mxu0
    %223 = vdwg.mxu0
    %v224 = vmax.f32 %v221, 0.0
    %v225 = vld [vmem:[%s5] sm:$0xff]
    %v226 = vld [vmem:[%s5 + $0x8] sm:$0xff]
    %v227 = vld [vmem:[%s5 + $0x10] sm:$0xff]
    %v228 = vld [vmem:[%s5 + $0x18] sm:$0xff]
    %v229 = vld [vmem:[%s6] sm:$0x1]
    %v231 = vlaneseq
    %v232 = vshrl.u32 %v231, 7
    %v233 = vsub.s32 0, %v232
    %v234 = vrot.slane %v229, %v233
    %vm236 = vcmask 261120
    %v238 = vsel %vm236, %v224, 0
    %240 = vmatprep.subr.mxu0 0.0
    %241 = vmatpush1.msra.mxu0 %v225
    %242 = vmatprep.subr.mxu0 0.0
    %243 = vmatpush1.msra.mxu0 %v226
    %244 = vmatprep.subr.mxu0 0.0
    %245 = vmatpush1.msra.mxu0 %v227
    %246 = vmatprep.subr.mxu0 0.0
    %247 = vmatpush1.msra.mxu0 %v228
    %248 = vmatprep.subr.mxu0 0.0
    %249 = vmatpush1.msra.mxu0 0.0
    %250 = vmatprep.subr.mxu0 0.0
    %251 = vmatpush1.msra.mxu0 0.0
    %252 = vmatprep.subr.mxu0 0.0
    %253 = vmatpush1.msra.mxu0 0.0
    %254 = vmatprep.subr.mxu0 0.0
    %255 = vmatpush1.msra.mxu0 0.0
    %256 = vmatprep.subr.mxu0 0.0
    %257 = vmatpush1.msra.mxu0 0.0
    %258 = vmatprep.subr.mxu0 0.0
    %259 = vmatpush1.msra.mxu0 0.0
    %260 = vmatprep.subr.mxu0 0.0
    %261 = vmatpush1.msra.mxu0 0.0
    %262 = vmatprep.subr.mxu0 0.0
    %263 = vmatpush1.msra.mxu0 0.0
    %264 = vmatprep.subr.mxu0 0.0
    %265 = vmatpush1.msra.mxu0 0.0
    %266 = vmatprep.subr.mxu0 0.0
    %267 = vmatpush1.msra.mxu0 0.0
    %268 = vmatprep.subr.mxu0 0.0
    %269 = vmatpush1.msra.mxu0 0.0
    %270 = vmatprep.subr.mxu0 0.0
    %271 = vmatpush1.msra.mxu0 0.0
    %272 = vmatprep.subr.mxu0 0.0
    %273 = vmatpush1.msra.mxu0 0.0
    %274 = vmatprep.subr.mxu0 0.0
    %275 = vmatpush1.msra.mxu0 0.0
    %276 = vmatprep.subr.mxu0 0.0
    %277 = vmatpush1.msra.mxu0 0.0
    %278 = vmatprep.subr.mxu0 0.0
    %279 = vmatpush1.msra.mxu0 0.0
    %280 = vmatprep.subr.mxu0 0.0
    %281 = vmatpush1.msra.mxu0 0.0
    %282 = vmatprep.subr.mxu0 0.0
    %283 = vmatpush1.msra.mxu0 0.0
    %284 = vmatprep.subr.mxu0 0.0
    %285 = vmatpush1.msra.mxu0 0.0
    %286 = vmatprep.subr.mxu0 0.0
    %287 = vmatpush1.msra.mxu0 0.0
    %288 = vmatprep.subr.mxu0 0.0
    %289 = vmatpush1.msra.mxu0 0.0
    %290 = vmatprep.subr.mxu0 0.0
    %291 = vmatpush1.msra.mxu0 0.0
    %292 = vmatprep.subr.mxu0 0.0
    %293 = vmatpush1.msra.mxu0 0.0
    %294 = vmatprep.subr.mxu0 0.0
    %295 = vmatpush1.msra.mxu0 0.0
    %296 = vmatprep.subr.mxu0 0.0
    %297 = vmatpush1.msra.mxu0 0.0
    %298 = vmatprep.subr.mxu0 0.0
    %299 = vmatpush1.msra.mxu0 0.0
    %300 = vmatprep.subr.mxu0 0.0
    %301 = vmatpush1.msra.mxu0 0.0
    %302 = vmatprep.subr.mxu0 0.0
    %303 = vmatpush1.msra.mxu0 0.0
    %304 = vmatprep.mubr.f32.mxu0 0.0
    %305 = vmatmul.mubr.f32.gmra.mrb[0].mxu0 %v238
    %v306 = vpop.f32.mrb[0].mxu0
    %v307 = vadd.f32 %v234, %v306
    %v308 = vpop.f32.mrb[0].mxu0
    %309 = vdwg.mxu0
    %v310 = vmax.f32 %v307, 0.0
    %v311 = vld [vmem:[%s7] sm:$0xff]
    %v312 = vld [vmem:[%s7 + $0x8] sm:$0xff]
    %v313 = vld [vmem:[%s7 + $0x10] sm:$0xff]
    %v314 = vld [vmem:[%s7 + $0x18] sm:$0xff]
    %v315 = vld [vmem:[%s8] sm:$0x1]
    %v317 = vlaneseq
    %v318 = vshrl.u32 %v317, 7
    %v319 = vsub.s32 0, %v318
    %v320 = vrot.slane %v315, %v319
    %v323 = vsel %vm236, %v310, 0
    %325 = vmatprep.subr.mxu0 0.0
    %326 = vmatpush1.msra.mxu0 %v311
    %327 = vmatprep.subr.mxu0 0.0
    %328 = vmatpush1.msra.mxu0 %v312
    %329 = vmatprep.subr.mxu0 0.0
    %330 = vmatpush1.msra.mxu0 %v313
    %331 = vmatprep.subr.mxu0 0.0
    %332 = vmatpush1.msra.mxu0 %v314
    %333 = vmatprep.subr.mxu0 0.0
    %334 = vmatpush1.msra.mxu0 0.0
    %335 = vmatprep.subr.mxu0 0.0
    %336 = vmatpush1.msra.mxu0 0.0
    %337 = vmatprep.subr.mxu0 0.0
    %338 = vmatpush1.msra.mxu0 0.0
    %339 = vmatprep.subr.mxu0 0.0
    %340 = vmatpush1.msra.mxu0 0.0
    %341 = vmatprep.subr.mxu0 0.0
    %342 = vmatpush1.msra.mxu0 0.0
    %343 = vmatprep.subr.mxu0 0.0
    %344 = vmatpush1.msra.mxu0 0.0
    %345 = vmatprep.subr.mxu0 0.0
    %346 = vmatpush1.msra.mxu0 0.0
    %347 = vmatprep.subr.mxu0 0.0
    %348 = vmatpush1.msra.mxu0 0.0
    %349 = vmatprep.subr.mxu0 0.0
    %350 = vmatpush1.msra.mxu0 0.0
    %351 = vmatprep.subr.mxu0 0.0
    %352 = vmatpush1.msra.mxu0 0.0
    %353 = vmatprep.subr.mxu0 0.0
    %354 = vmatpush1.msra.mxu0 0.0
    %355 = vmatprep.subr.mxu0 0.0
    %356 = vmatpush1.msra.mxu0 0.0
    %357 = vmatprep.subr.mxu0 0.0
    %358 = vmatpush1.msra.mxu0 0.0
    %359 = vmatprep.subr.mxu0 0.0
    %360 = vmatpush1.msra.mxu0 0.0
    %361 = vmatprep.subr.mxu0 0.0
    %362 = vmatpush1.msra.mxu0 0.0
    %363 = vmatprep.subr.mxu0 0.0
    %364 = vmatpush1.msra.mxu0 0.0
    %365 = vmatprep.subr.mxu0 0.0
    %366 = vmatpush1.msra.mxu0 0.0
    %367 = vmatprep.subr.mxu0 0.0
    %368 = vmatpush1.msra.mxu0 0.0
    %369 = vmatprep.subr.mxu0 0.0
    %370 = vmatpush1.msra.mxu0 0.0
    %371 = vmatprep.subr.mxu0 0.0
    %372 = vmatpush1.msra.mxu0 0.0
    %373 = vmatprep.subr.mxu0 0.0
    %374 = vmatpush1.msra.mxu0 0.0
    %375 = vmatprep.subr.mxu0 0.0
    %376 = vmatpush1.msra.mxu0 0.0
    %377 = vmatprep.subr.mxu0 0.0
    %378 = vmatpush1.msra.mxu0 0.0
    %379 = vmatprep.subr.mxu0 0.0
    %380 = vmatpush1.msra.mxu0 0.0
    %381 = vmatprep.subr.mxu0 0.0
    %382 = vmatpush1.msra.mxu0 0.0
    %383 = vmatprep.subr.mxu0 0.0
    %384 = vmatpush1.msra.mxu0 0.0
    %385 = vmatprep.subr.mxu0 0.0
    %386 = vmatpush1.msra.mxu0 0.0
    %387 = vmatprep.subr.mxu0 0.0
    %388 = vmatpush1.msra.mxu0 0.0
    %389 = vmatprep.mubr.f32.mxu0 0.0
    %390 = vmatmul.mubr.f32.gmra.mrb[0].mxu0 %v323
    %v391 = vpop.f32.mrb[0].mxu0
    %v392 = vadd.f32 %v320, %v391
    %v393 = vpop.f32.mrb[0].mxu0
    %394 = vdwg.mxu0
    %395 = vst [vmem:[#allocation2] sm:$0xff] %v392
    // Predicated region
    $region38: #{tpu_custom_call.1} parent=1 // pred_check
      _
    $region39: #{tpu_custom_call.1} parent=1 // pred_check_branch
      %397 = sbr.rel (0) target = $region41
    $region40: #{tpu_custom_call.1} parent=1 // pred_region
      %s399 = ssub.s32 128, 128
      %400 = vsyncadd [#allocation3], %s399
      %s402 = sshll.u32 [#allocation2], 4
      %s403 = int_to_ptr.vmem [resolvable:$true] %s402
      %405 = dma.vmem_to_hbm [thread:$0]  %s403, 128, %s9, [#allocation3]
    $region41: #{tpu_custom_call.1} parent=1 // pred_fallthru
      _
    // Predicated region
    $region42: #{tpu_custom_call.1} parent=1 // pred_check
      _
    $region43: #{tpu_custom_call.1} parent=1 // pred_check_branch
      %407 = sbr.rel (0) target = $region45
    $region44: #{tpu_custom_call.1} parent=1 // pred_region
      %408 = dma.done [#allocation3], 128
    $region45: #{tpu_custom_call.1} parent=1 // pred_fallthru
      _
    %409 = vsyncpa [#allocation3], 1

</llo_original>
